<compile_context>
chip_gen: v5e
topology: v5e:2x2
jax: 0.10.0
libtpu: 0.0.40
codegen_flags: <defaults>
</compile_context>

<pallas_src>
import jax
import jax.numpy as jnp
from types import SimpleNamespace

from jax.experimental import pallas as pl
from jax.experimental.pallas import tpu as pltpu


# ---------------------------------------------------------------------------
# Wrapper-side layout plumbing (not compute).
# ---------------------------------------------------------------------------
def _cdiv(a, b):
    return -(-a // b)


def _plan_lane_dense(numel, max_block_elems):
    """Lane-dense 2-D layout plan for a flattened tensor.

    lanes      : widest of (512, 256, 128) dividing numel -> unmasked wide loads
    block_rows : <= max_block_elems // lanes, multiple of 8 (or == rows)
    rows       : padded row count (multiple of block_rows)
    """
    lanes = 512 if numel % 512 == 0 else (256 if numel % 256 == 0 else 128)
    rows = _cdiv(numel, lanes)
    cap = max(8, max_block_elems // lanes)
    n_blocks = _cdiv(rows, cap)
    if n_blocks == 1:
        block_rows = rows                       # single full block
    else:
        block_rows = _cdiv(_cdiv(rows, n_blocks), 8) * 8   # balanced, 8-aligned
    rows_pad = n_blocks * block_rows
    return SimpleNamespace(lanes=lanes, rows=rows_pad, block_rows=block_rows,
                           n_blocks=n_blocks, pad=rows_pad * lanes - numel)


def _to_lane_dense(x, plan):
    flat = x.reshape(-1)
    if plan.pad:
        # TODO(synk): padding round-trips the tensor through HBM once; pick
        # production shapes with numel % 128 == 0 so this stays a no-op.
        flat = jnp.pad(flat, (0, plan.pad))
    return flat.reshape(plan.rows, plan.lanes)


def _prompt_lane_major(x, prompt_len):
    """(B, n_seg*P, D) -> (n_seg, D, Mpad), M = B*P on the lane axis (pad to 128).

    Segment selection becomes a free leading-dim slice, the D-reduction a
    sublane reduce, and every per-pair product / accumulator is lane-dense.
    Prompt tensors are tiny, so this wrapper-side transpose is negligible.
    TODO(synk): for very large prompt tensors, slice segments in-kernel from
    the original layout instead of transposing in the wrapper.
    """
    B, N, D = x.shape
    assert N % prompt_len == 0, "prompt positions must tile into segments"
    n_seg = N // prompt_len
    x = x.reshape(B, n_seg, prompt_len, D)
    x = jnp.transpose(x, (1, 3, 0, 2)).reshape(n_seg, D, B * prompt_len)
    m_true = B * prompt_len
    m_pad = _cdiv(m_true, 128) * 128
    if m_pad != m_true:
        x = jnp.pad(x, ((0, 0), (0, 0), (0, m_pad - m_true)))
    return x, m_true


# ---------------------------------------------------------------------------
# In-kernel prompt statistics (lane-dense layout).
#   x: (n_seg, D, Mpad) f32, zero-padded lanes beyond m_true.
#   returns (sum_{i<j} mean_M cos_sim(seg_i, seg_j), mean ||x||_2 over D).
# ---------------------------------------------------------------------------
def _prompt_stats(x, m_true):
    n_seg = x.shape[0]
    sq, inv_norm = [], []
    norm_sum = jnp.float32(0.0)
    for i in range(n_seg):
        xi = x[i]                                       # (D, Mpad) static slice
        s = jnp.sum(xi * xi, axis=0, keepdims=True)     # (1, Mpad) sublane reduce
        sq.append(s)
        norm_sum = norm_sum + jnp.sum(jnp.sqrt(s))      # padded lanes: sqrt(0)=0
        # 1 / max(||x||, 1e-8): matches F.cosine_similarity clamp semantics,
        # O(n_seg) EUP rsqrts instead of O(n_seg^2) approx reciprocals.
        inv_norm.append(jax.lax.rsqrt(jnp.maximum(s, 1e-16)))
    norm_loss = norm_sum * (1.0 / (n_seg * m_true))

    acc = jnp.zeros_like(sq[0])                         # (1, Mpad) lane-dense
    for i in range(n_seg):                              # unrolled at trace time
        for j in range(i + 1, n_seg):
            dot = jnp.sum(x[i] * x[j], axis=0, keepdims=True)   # (1, Mpad)
            acc = acc + dot * inv_norm[i] * inv_norm[j]         # padded: dot==0
    # sum over pairs of per-pair means == sum(acc) / m_true (one lane reduce)
    sim_loss = jnp.sum(acc) * (1.0 / m_true)
    return sim_loss, norm_loss


# ---------------------------------------------------------------------------
# Kernel 1 (small path): whole loss in one grid-less call.
# refs: [scal SMEM, (pred_t, gt_t) VMEM x T, mus VMEM, prompts VMEM, out SMEM]
# scal = [w_0..w_{T-1}, 1/n_0..1/n_{T-1}, l_spe, l_spe_norm, l_sha, l_sha_norm]
# ---------------------------------------------------------------------------
def _make_fused_kernel(n_tasks, m_mus, m_prompts):
    def kernel(*refs):
        scal = refs[0]
        mus_ref = refs[1 + 2 * n_tasks]
        prompts_ref = refs[2 + 2 * n_tasks]
        out_ref = refs[3 + 2 * n_tasks]

        total = jnp.float32(0.0)
        for t in range(n_tasks):
            pred_ref = refs[1 + 2 * t]
            gt_ref = refs[2 + 2 * t]
            # cast BEFORE the subtraction (bf16-safe, matches f32 reference)
            d = pred_ref[...].astype(jnp.float32) - gt_ref[...].astype(jnp.float32)
            loss_t = jnp.sum(jnp.abs(d)) * scal[n_tasks + t]   # true-count mean
            out_ref[t] = loss_t
            total = total + scal[t] * loss_t

        base = 2 * n_tasks
        sim_m, norm_m = _prompt_stats(mus_ref[...].astype(jnp.float32), m_mus)
        total = total + scal[base + 0] * sim_m + scal[base + 1] * norm_m
        sim_p, norm_p = _prompt_stats(prompts_ref[...].astype(jnp.float32), m_prompts)
        total = total - scal[base + 2] * sim_p + scal[base + 3] * norm_p
        out_ref[n_tasks] = total
    return kernel


# ---------------------------------------------------------------------------
# Kernel 2 (tiled path, call 1): per-(split, task) abs-diff partial SUMS.
# grid = (n_splits "parallel", blocks_per_split "arbitrary")
# refs: [(pred_t, gt_t) VMEM blocks x T, out VMEM (8,128) per split, acc SMEM]
# ---------------------------------------------------------------------------
def _make_l1_partial_kernel(n_tasks, nb_per_task, blocks_per_split):
    def kernel(*refs):
        out_ref = refs[2 * n_tasks]
        acc_sm = refs[2 * n_tasks + 1]
        b = pl.program_id(1)
        g = pl.program_id(0) * blocks_per_split + b   # global block index

        @pl.when(b == 0)
        def _():
            for t in range(n_tasks):
                acc_sm[t] = jnp.float32(0.0)

        for t in range(n_tasks):
            pred_ref = refs[2 * t]
            gt_ref = refs[2 * t + 1]

            @pl.when(g < nb_per_task[t])              # skip clamped re-reads
            def _(t=t, pred_ref=pred_ref, gt_ref=gt_ref):
                d = (pred_ref[...].astype(jnp.float32)
                     - gt_ref[...].astype(jnp.float32))
                acc_sm[t] = acc_sm[t] + jnp.sum(jnp.abs(d))

        @pl.when(b == pl.num_programs(1) - 1)
        def _():
            # one lane-dense vector store per split (no scalar VMEM writes)
            lane = jax.lax.broadcasted_iota(jnp.int32, (8, 128), 1)
            tile = jnp.zeros((8, 128), jnp.float32)
            for t in range(n_tasks):
                tile = jnp.where(lane == t, acc_sm[t], tile)
            out_ref[...] = tile
    return kernel


# ---------------------------------------------------------------------------
# Kernel 3 (tiled path, call 2): tiny finalize — combine split partial sums,
# per-task means, weighted total and prompt statistics.
# ---------------------------------------------------------------------------
def _make_finalize_kernel(n_tasks, n_splits, m_mus, m_prompts):
    def kernel(psum_ref, scal_ref, mus_ref, prompts_ref, out_ref):
        total = jnp.float32(0.0)
        for t in range(n_tasks):
            s = jnp.float32(0.0)
            for sp in range(n_splits):
                s = s + psum_ref[sp * 8, t]
            loss_t = s * scal_ref[n_tasks + t]
            out_ref[t] = loss_t
            total = total + scal_ref[t] * loss_t

        base = 2 * n_tasks
        sim_m, norm_m = _prompt_stats(mus_ref[...].astype(jnp.float32), m_mus)
        total = total + scal_ref[base + 0] * sim_m + scal_ref[base + 1] * norm_m
        sim_p, norm_p = _prompt_stats(prompts_ref[...].astype(jnp.float32), m_prompts)
        total = total - scal_ref[base + 2] * sim_p + scal_ref[base + 3] * norm_p
        out_ref[n_tasks] = total
    return kernel


# ---------------------------------------------------------------------------
# MultiTaskLoss wrapper.
# ---------------------------------------------------------------------------
class MultiTaskLossPallas:
    # pred+gt bytes above which the tiled, pipelined path is used.
    TILED_THRESHOLD_BYTES = 4 << 20
    MAX_BLOCK_ELEMS = 512 * 512          # ~1 MiB f32 per stream per buffer
    VMEM_LIMIT_CAP = 48 << 20            # safe on v7x (64 MiB physical VMEM)

    def __init__(self, p, tasks, loss_ft, loss_weights):
        assert set(tasks) == set(loss_ft.keys())
        assert set(tasks) == set(loss_weights.keys())
        self.p = p
        self.tasks = list(tasks)
        # TODO(synk): arbitrary per-task loss modules (nn.ModuleDict) cannot be
        # fused generically; both kernel paths implement mean-L1 for every task.
        self.loss_ft = loss_ft
        self.loss_weights = loss_weights

    # -- shared helpers ------------------------------------------------------
    def _scalars(self, tasks, pred):
        vals = [float(self.loss_weights[t]) for t in tasks]
        vals += [1.0 / float(pred[t].size) for t in tasks]     # true counts
        vals += [float(self.p.lambda_spe), float(self.p.lambda_spe_norm),
                 float(self.p.lambda_sha), float(self.p.lambda_sha_norm)]
        return jnp.asarray(vals, jnp.float32)

    def _prompts(self, pred):
        mus, m_mus = _prompt_lane_major(pred['task_mus'], self.p.prompt_len)
        prompts, m_pr = _prompt_lane_major(pred['task_prompts'], self.p.prompt_len)
        return mus, m_mus, prompts, m_pr

    def __call__(self, pred, gt, tasks, force_tiled=None):
        tasks = list(tasks)
        nbytes = sum(2 * pred[t].size * pred[t].dtype.itemsize for t in tasks)
        use_tiled = (force_tiled if force_tiled is not None
                     else nbytes >= self.TILED_THRESHOLD_BYTES)
        if use_tiled:
            return self._forward_tiled(pred, gt, tasks)
        return self._forward_fused(pred, gt, tasks)

    # -- small path: one grid-less fused call --------------------------------
    def _forward_fused(self, pred, gt, tasks):
        n_tasks = len(tasks)
        flat = []
        for t in tasks:
            plan = _plan_lane_dense(pred[t].size, max_block_elems=1 << 30)
            flat.append(_to_lane_dense(pred[t], plan))
            flat.append(_to_lane_dense(gt[t], plan))
        mus, m_mus, prompts, m_pr = self._prompts(pred)
        scal = self._scalars(tasks, pred)

        smem = pltpu.MemorySpace.SMEM
        vmem = pltpu.MemorySpace.VMEM
        in_specs = ([pl.BlockSpec(memory_space=smem)]
                    + [pl.BlockSpec(memory_space=vmem)] * (2 * n_tasks + 2))

        bytes_acc = sum(int(x.size) * x.dtype.itemsize for x in flat)
        bytes_acc += int(mus.size + prompts.size) * 4
        out = pl.pallas_call(
            _make_fused_kernel(n_tasks, m_mus, m_pr),
            out_shape=jax.ShapeDtypeStruct((n_tasks + 1,), jnp.float32),
            in_specs=in_specs,
            out_specs=pl.BlockSpec(memory_space=smem),
            cost_estimate=pl.CostEstimate(
                flops=int(3 * sum(pred[t].size for t in tasks)
                          + 4 * (mus.size + prompts.size)),
                transcendentals=int(2 * (mus.shape[0] * mus.shape[2]
                                         + prompts.shape[0] * prompts.shape[2])),
                bytes_accessed=int(bytes_acc)),
        )(scal, *flat, mus, prompts)

        result = {t: out[i] for i, t in enumerate(tasks)}
        result['total'] = out[n_tasks]
        return result

    # -- production path: tiled pipelined L1 sums + tiny finalize ------------
    def _forward_tiled(self, pred, gt, tasks):
        n_tasks = len(tasks)
        plans, flat_inputs, in_specs = [], [], []
        for t in tasks:
            pln = _plan_lane_dense(pred[t].size, max_block_elems=self.MAX_BLOCK_ELEMS)
            plans.append(pln)
            flat_inputs.append(_to_lane_dense(pred[t], pln))
            flat_inputs.append(_to_lane_dense(gt[t], pln))

        nb_per_task = [pln.n_blocks for pln in plans]
        NB = max(nb_per_task)
        # Leading "parallel" axis: shards across v7x's 2 TensorCores (harmless
        # sequential loop on v5e/v6e).  Reduction axis stays last ("arbitrary").
        n_splits = 2 if NB >= 2 else 1
        bps = _cdiv(NB, n_splits)

        for ti in range(n_tasks):
            pln = plans[ti]

            def idx_map(s, b, nb=pln.n_blocks, bps=bps):
                # clamp: tasks with fewer blocks keep re-selecting their last
                # block (no re-DMA since the index is unchanged); compute is
                # skipped in-kernel via pl.when(g < nb).
                return (jnp.minimum(s * bps + b, nb - 1), 0)

            spec = pl.BlockSpec((pln.block_rows, pln.lanes), idx_map)
            in_specs += [spec, spec]

        # Generation-aware VMEM budget: double-buffered input streams + headroom,
        # capped below v7x's 64 MiB physical VMEM; raises v5e's 16 MiB default.
        vmem_need = sum(2 * 2 * pln.block_rows * pln.lanes
                        * pred[t].dtype.itemsize
                        for pln, t in zip(plans, tasks))
        vmem_limit = int(min(self.VMEM_LIMIT_CAP,
                             max(32 << 20, vmem_need + (8 << 20))))

        bytes_acc = sum(int(x.size) * x.dtype.itemsize for x in flat_inputs)
        psums = pl.pallas_call(
            _make_l1_partial_kernel(n_tasks, nb_per_task, bps),
            out_shape=jax.ShapeDtypeStruct((n_splits * 8, 128), jnp.float32),
            grid_spec=pltpu.PrefetchScalarGridSpec(
                num_scalar_prefetch=0,
                grid=(n_splits, bps),
                in_specs=in_specs,
                out_specs=pl.BlockSpec((8, 128), lambda s, b: (s, 0)),
                scratch_shapes=[pltpu.SMEM((n_tasks,), jnp.float32)]),
            compiler_params=pltpu.CompilerParams(
                dimension_semantics=("parallel", "arbitrary"),
                vmem_limit_bytes=vmem_limit),
            cost_estimate=pl.CostEstimate(
                flops=int(3 * sum(pred[t].size for t in tasks)),
                transcendentals=0,
                bytes_accessed=int(bytes_acc)),
        )(*flat_inputs)

        mus, m_mus, prompts, m_pr = self._prompts(pred)
        scal = self._scalars(tasks, pred)
        smem = pltpu.MemorySpace.SMEM
        vmem = pltpu.MemorySpace.VMEM
        out = pl.pallas_call(
            _make_finalize_kernel(n_tasks, n_splits, m_mus, m_pr),
            out_shape=jax.ShapeDtypeStruct((n_tasks + 1,), jnp.float32),
            in_specs=[pl.BlockSpec(memory_space=smem),
                      pl.BlockSpec(memory_space=smem),
                      pl.BlockSpec(memory_space=vmem),
                      pl.BlockSpec(memory_space=vmem)],
            out_specs=pl.BlockSpec(memory_space=smem),
        )(psums, scal, mus, prompts)

        result = {t: out[i] for i, t in enumerate(tasks)}
        result['total'] = out[n_tasks]
        return result


# ---------------------------------------------------------------------------
# Pure-JAX reference (mirrors the PyTorch module) for correctness checking.
# ---------------------------------------------------------------------------
def _ref_prompt_stats(x, prompt_len):
    x = x.astype(jnp.float32)
    norms = jnp.sqrt(jnp.sum(x * x, axis=-1))
    norm_loss = jnp.mean(norms)
    n_seg = x.shape[1] // prompt_len
    sim = jnp.float32(0.0)
    for i in range(n_seg):
        for j in range(i + 1, n_seg):
            vi = x[:, i * prompt_len:(i + 1) * prompt_len, :]
            vj = x[:, j * prompt_len:(j + 1) * prompt_len, :]
            dot = jnp.sum(vi * vj, axis=-1)
            ni = norms[:, i * prompt_len:(i + 1) * prompt_len]
            nj = norms[:, j * prompt_len:(j + 1) * prompt_len]
            sim = sim + jnp.mean(dot / jnp.maximum(ni * nj, 1e-8))
    return sim, norm_loss


def _ref_forward(p, tasks, loss_weights, pred, gt):
    out = {t: jnp.mean(jnp.abs(pred[t].astype(jnp.float32)
                               - gt[t].astype(jnp.float32))) for t in tasks}
    total = jnp.sum(jnp.stack([loss_weights[t] * out[t] for t in tasks]))
    sim_m, norm_m = _ref_prompt_stats(pred['task_mus'], p.prompt_len)
    total = total + p.lambda_spe * sim_m + p.lambda_spe_norm * norm_m
    sim_p, norm_p = _ref_prompt_stats(pred['task_prompts'], p.prompt_len)
    total = total + p.lambda_sha * (-sim_p) + p.lambda_sha_norm * norm_p
    out['total'] = total
    return out


if __name__ == "__main__":
    p = SimpleNamespace(prompt_len=8,
                        lambda_spe=0.1, lambda_spe_norm=0.01,
                        lambda_sha=0.1, lambda_sha_norm=0.01)

    tasks = ['depth', 'normals']
    loss_weights = {'depth': 1.0, 'normals': 0.5}
    # Placeholder "ModuleDict" (interface parity only; fused kernels = mean-L1).
    mean_l1 = lambda a, b: jnp.mean(jnp.abs(a - b))
    loss_ft = {'depth': mean_l1, 'normals': mean_l1}

    B, C, H, W = 2, 4, 16, 16
    D = 32
    n_seg_mus, n_seg_prompts = 3, 2

    key = jax.random.PRNGKey(0)
    keys = jax.random.split(key, 6)
    pred = {
        'depth':        jax.random.normal(keys[0], (B, C, H, W), jnp.float32),
        'normals':      jax.random.normal(keys[1], (B, C, H, W), jnp.float32),
        'task_mus':     jax.random.normal(keys[2], (B, n_seg_mus * p.prompt_len, D),
                                          jnp.float32),
        'task_prompts': jax.random.normal(keys[3], (B, n_seg_prompts * p.prompt_len, D),
                                          jnp.float32),
    }
    gt = {
        'depth':   jax.random.normal(keys[4], (B, C, H, W), jnp.float32),
        'normals': jax.random.normal(keys[5], (B, C, H, W), jnp.float32),
    }

    mtl = MultiTaskLossPallas(p, tasks, loss_ft, loss_weights)
    ref = _ref_forward(p, tasks, loss_weights, pred, gt)

    # Small-input path (single fused call) — the default at these shapes.
    out_fused = mtl(pred, gt, tasks)
    out_fused = jax.tree_util.tree_map(jax.block_until_ready, out_fused)

    # Production path (tiled pipelined L1 sums + tiny finalize), forced here
    # so both code paths are exercised at the toy sizes.
    out_tiled = mtl(pred, gt, tasks, force_tiled=True)
    out_tiled = jax.tree_util.tree_map(jax.block_until_ready, out_tiled)

    for name, out in (("fused", out_fused), ("tiled", out_tiled)):
        for k in tasks + ['total']:
            assert jnp.allclose(out[k], ref[k], rtol=1e-4, atol=1e-5), (
                f"{name} mismatch on {k}: {out[k]} vs {ref[k]}")

    print("KERNEL_OK")
</pallas_src>

<mosaic_0001>
module attributes {stable_mosaic.version = 11 : i64} {
  func.func @kernel(%arg0: memref<8xf32, #tpu.memory_space<smem>>, %arg1: memref<4x512xf32, #tpu.memory_space<vmem>>, %arg2: memref<4x512xf32, #tpu.memory_space<vmem>>, %arg3: memref<4x512xf32, #tpu.memory_space<vmem>>, %arg4: memref<4x512xf32, #tpu.memory_space<vmem>>, %arg5: memref<3x32x128xf32, #tpu.memory_space<vmem>>, %arg6: memref<2x32x128xf32, #tpu.memory_space<vmem>>, %arg7: memref<3xf32, #tpu.memory_space<smem>>) attributes {dimension_semantics = [], scalar_prefetch = 0 : i64, scratch_operands = 0 : i64, tpu.core_type = #tpu.core_type<tc>} {
    %c0 = arith.constant 0 : index
    %c0_0 = arith.constant 0 : index
    %0 = vector.load %arg1[%c0, %c0_0] : memref<4x512xf32, #tpu.memory_space<vmem>>, vector<4x512xf32>
    %c0_1 = arith.constant 0 : index
    %c0_2 = arith.constant 0 : index
    %1 = vector.load %arg2[%c0_1, %c0_2] : memref<4x512xf32, #tpu.memory_space<vmem>>, vector<4x512xf32>
    %2 = arith.subf %0, %1 : vector<4x512xf32>
    %3 = math.absf %2 : vector<4x512xf32>
    %4 = vector.shape_cast %3 : vector<4x512xf32> to vector<1x4x512xf32>
    %cst = arith.constant dense<0.000000e+00> : vector<1xf32>
    %5 = vector.multi_reduction <add>, %4, %cst [1, 2] : vector<1x4x512xf32> to vector<1xf32>
    %6 = vector.shape_cast %5 : vector<1xf32> to vector<1x1x1xf32>
    %7 = vector.extract %6[0, 0, 0] : f32 from vector<1x1x1xf32>
    %c2 = arith.constant 2 : index
    %8 = memref.load %arg0[%c2] : memref<8xf32, #tpu.memory_space<smem>>
    %9 = arith.mulf %7, %8 : f32
    %c0_3 = arith.constant 0 : index
    %10 = memref.load %arg7[%c0_3] : memref<3xf32, #tpu.memory_space<smem>>
    memref.store %9, %arg7[%c0_3] : memref<3xf32, #tpu.memory_space<smem>>
    %c0_4 = arith.constant 0 : index
    %11 = memref.load %arg0[%c0_4] : memref<8xf32, #tpu.memory_space<smem>>
    %12 = arith.mulf %11, %9 : f32
    %cst_5 = arith.constant 0.000000e+00 : f32
    %13 = arith.addf %cst_5, %12 : f32
    %c0_6 = arith.constant 0 : index
    %c0_7 = arith.constant 0 : index
    %14 = vector.load %arg3[%c0_6, %c0_7] : memref<4x512xf32, #tpu.memory_space<vmem>>, vector<4x512xf32>
    %c0_8 = arith.constant 0 : index
    %c0_9 = arith.constant 0 : index
    %15 = vector.load %arg4[%c0_8, %c0_9] : memref<4x512xf32, #tpu.memory_space<vmem>>, vector<4x512xf32>
    %16 = arith.subf %14, %15 : vector<4x512xf32>
    %17 = math.absf %16 : vector<4x512xf32>
    %18 = vector.shape_cast %17 : vector<4x512xf32> to vector<1x4x512xf32>
    %cst_10 = arith.constant dense<0.000000e+00> : vector<1xf32>
    %19 = vector.multi_reduction <add>, %18, %cst_10 [1, 2] : vector<1x4x512xf32> to vector<1xf32>
    %20 = vector.shape_cast %19 : vector<1xf32> to vector<1x1x1xf32>
    %21 = vector.extract %20[0, 0, 0] : f32 from vector<1x1x1xf32>
    %c3 = arith.constant 3 : index
    %22 = memref.load %arg0[%c3] : memref<8xf32, #tpu.memory_space<smem>>
    %23 = arith.mulf %21, %22 : f32
    %c1 = arith.constant 1 : index
    %24 = memref.load %arg7[%c1] : memref<3xf32, #tpu.memory_space<smem>>
    memref.store %23, %arg7[%c1] : memref<3xf32, #tpu.memory_space<smem>>
    %c1_11 = arith.constant 1 : index
    %25 = memref.load %arg0[%c1_11] : memref<8xf32, #tpu.memory_space<smem>>
    %26 = arith.mulf %25, %23 : f32
    %27 = arith.addf %13, %26 : f32
    %c0_12 = arith.constant 0 : index
    %c0_13 = arith.constant 0 : index
    %c0_14 = arith.constant 0 : index
    %28 = vector.load %arg5[%c0_12, %c0_13, %c0_14] : memref<3x32x128xf32, #tpu.memory_space<vmem>>, vector<3x32x128xf32>
    %29 = vector.extract_strided_slice %28 {offsets = [0, 0, 0], sizes = [1, 32, 128], strides = [1, 1, 1]} : vector<3x32x128xf32> to vector<1x32x128xf32>
    %30 = vector.shape_cast %29 : vector<1x32x128xf32> to vector<32x128xf32>
    %31 = arith.mulf %30, %30 : vector<32x128xf32>
    %cst_15 = arith.constant dense<0.000000e+00> : vector<128xf32>
    %32 = vector.multi_reduction <add>, %31, %cst_15 [0] : vector<32x128xf32> to vector<128xf32>
    %33 = vector.shape_cast %32 : vector<128xf32> to vector<1x128xf32>
    %34 = math.sqrt %33 : vector<1x128xf32>
    %35 = vector.shape_cast %34 : vector<1x128xf32> to vector<1x1x128xf32>
    %cst_16 = arith.constant dense<0.000000e+00> : vector<1xf32>
    %36 = vector.multi_reduction <add>, %35, %cst_16 [1, 2] : vector<1x1x128xf32> to vector<1xf32>
    %37 = vector.shape_cast %36 : vector<1xf32> to vector<1x1x1xf32>
    %38 = vector.extract %37[0, 0, 0] : f32 from vector<1x1x1xf32>
    %cst_17 = arith.constant 0.000000e+00 : f32
    %39 = arith.addf %cst_17, %38 : f32
    %cst_18 = arith.constant 1.000000e-16 : f32
    %40 = vector.broadcast %cst_18 : f32 to vector<1x128xf32>
    %41 = arith.maximumf %33, %40 : vector<1x128xf32>
    %42 = math.rsqrt %41 : vector<1x128xf32>
    %43 = vector.extract_strided_slice %28 {offsets = [1, 0, 0], sizes = [1, 32, 128], strides = [1, 1, 1]} : vector<3x32x128xf32> to vector<1x32x128xf32>
    %44 = vector.shape_cast %43 : vector<1x32x128xf32> to vector<32x128xf32>
    %45 = arith.mulf %44, %44 : vector<32x128xf32>
    %cst_19 = arith.constant dense<0.000000e+00> : vector<128xf32>
    %46 = vector.multi_reduction <add>, %45, %cst_19 [0] : vector<32x128xf32> to vector<128xf32>
    %47 = vector.shape_cast %46 : vector<128xf32> to vector<1x128xf32>
    %48 = math.sqrt %47 : vector<1x128xf32>
    %49 = vector.shape_cast %48 : vector<1x128xf32> to vector<1x1x128xf32>
    %cst_20 = arith.constant dense<0.000000e+00> : vector<1xf32>
    %50 = vector.multi_reduction <add>, %49, %cst_20 [1, 2] : vector<1x1x128xf32> to vector<1xf32>
    %51 = vector.shape_cast %50 : vector<1xf32> to vector<1x1x1xf32>
    %52 = vector.extract %51[0, 0, 0] : f32 from vector<1x1x1xf32>
    %53 = arith.addf %39, %52 : f32
    %cst_21 = arith.constant 1.000000e-16 : f32
    %54 = vector.broadcast %cst_21 : f32 to vector<1x128xf32>
    %55 = arith.maximumf %47, %54 : vector<1x128xf32>
    %56 = math.rsqrt %55 : vector<1x128xf32>
    %57 = vector.extract_strided_slice %28 {offsets = [2, 0, 0], sizes = [1, 32, 128], strides = [1, 1, 1]} : vector<3x32x128xf32> to vector<1x32x128xf32>
    %58 = vector.shape_cast %57 : vector<1x32x128xf32> to vector<32x128xf32>
    %59 = arith.mulf %58, %58 : vector<32x128xf32>
    %cst_22 = arith.constant dense<0.000000e+00> : vector<128xf32>
    %60 = vector.multi_reduction <add>, %59, %cst_22 [0] : vector<32x128xf32> to vector<128xf32>
    %61 = vector.shape_cast %60 : vector<128xf32> to vector<1x128xf32>
    %62 = math.sqrt %61 : vector<1x128xf32>
    %63 = vector.shape_cast %62 : vector<1x128xf32> to vector<1x1x128xf32>
    %cst_23 = arith.constant dense<0.000000e+00> : vector<1xf32>
    %64 = vector.multi_reduction <add>, %63, %cst_23 [1, 2] : vector<1x1x128xf32> to vector<1xf32>
    %65 = vector.shape_cast %64 : vector<1xf32> to vector<1x1x1xf32>
    %66 = vector.extract %65[0, 0, 0] : f32 from vector<1x1x1xf32>
    %67 = arith.addf %53, %66 : f32
    %cst_24 = arith.constant 1.000000e-16 : f32
    %68 = vector.broadcast %cst_24 : f32 to vector<1x128xf32>
    %69 = arith.maximumf %61, %68 : vector<1x128xf32>
    %70 = math.rsqrt %69 : vector<1x128xf32>
    %cst_25 = arith.constant 0.020833334 : f32
    %71 = arith.mulf %67, %cst_25 : f32
    %cst_26 = arith.constant 0.000000e+00 : f32
    %72 = vector.broadcast %cst_26 : f32 to vector<1x128xf32>
    %73 = vector.extract_strided_slice %28 {offsets = [0, 0, 0], sizes = [1, 32, 128], strides = [1, 1, 1]} : vector<3x32x128xf32> to vector<1x32x128xf32>
    %74 = vector.shape_cast %73 : vector<1x32x128xf32> to vector<32x128xf32>
    %75 = vector.extract_strided_slice %28 {offsets = [1, 0, 0], sizes = [1, 32, 128], strides = [1, 1, 1]} : vector<3x32x128xf32> to vector<1x32x128xf32>
    %76 = vector.shape_cast %75 : vector<1x32x128xf32> to vector<32x128xf32>
    %77 = arith.mulf %74, %76 : vector<32x128xf32>
    %cst_27 = arith.constant dense<0.000000e+00> : vector<128xf32>
    %78 = vector.multi_reduction <add>, %77, %cst_27 [0] : vector<32x128xf32> to vector<128xf32>
    %79 = vector.shape_cast %78 : vector<128xf32> to vector<1x128xf32>
    %80 = arith.mulf %79, %42 : vector<1x128xf32>
    %81 = arith.mulf %80, %56 : vector<1x128xf32>
    %82 = arith.addf %72, %81 : vector<1x128xf32>
    %83 = vector.extract_strided_slice %28 {offsets = [0, 0, 0], sizes = [1, 32, 128], strides = [1, 1, 1]} : vector<3x32x128xf32> to vector<1x32x128xf32>
    %84 = vector.shape_cast %83 : vector<1x32x128xf32> to vector<32x128xf32>
    %85 = vector.extract_strided_slice %28 {offsets = [2, 0, 0], sizes = [1, 32, 128], strides = [1, 1, 1]} : vector<3x32x128xf32> to vector<1x32x128xf32>
    %86 = vector.shape_cast %85 : vector<1x32x128xf32> to vector<32x128xf32>
    %87 = arith.mulf %84, %86 : vector<32x128xf32>
    %cst_28 = arith.constant dense<0.000000e+00> : vector<128xf32>
    %88 = vector.multi_reduction <add>, %87, %cst_28 [0] : vector<32x128xf32> to vector<128xf32>
    %89 = vector.shape_cast %88 : vector<128xf32> to vector<1x128xf32>
    %90 = arith.mulf %89, %42 : vector<1x128xf32>
    %91 = arith.mulf %90, %70 : vector<1x128xf32>
    %92 = arith.addf %82, %91 : vector<1x128xf32>
    %93 = vector.extract_strided_slice %28 {offsets = [1, 0, 0], sizes = [1, 32, 128], strides = [1, 1, 1]} : vector<3x32x128xf32> to vector<1x32x128xf32>
    %94 = vector.shape_cast %93 : vector<1x32x128xf32> to vector<32x128xf32>
    %95 = vector.extract_strided_slice %28 {offsets = [2, 0, 0], sizes = [1, 32, 128], strides = [1, 1, 1]} : vector<3x32x128xf32> to vector<1x32x128xf32>
    %96 = vector.shape_cast %95 : vector<1x32x128xf32> to vector<32x128xf32>
    %97 = arith.mulf %94, %96 : vector<32x128xf32>
    %cst_29 = arith.constant dense<0.000000e+00> : vector<128xf32>
    %98 = vector.multi_reduction <add>, %97, %cst_29 [0] : vector<32x128xf32> to vector<128xf32>
    %99 = vector.shape_cast %98 : vector<128xf32> to vector<1x128xf32>
    %100 = arith.mulf %99, %56 : vector<1x128xf32>
    %101 = arith.mulf %100, %70 : vector<1x128xf32>
    %102 = arith.addf %92, %101 : vector<1x128xf32>
    %103 = vector.shape_cast %102 : vector<1x128xf32> to vector<1x1x128xf32>
    %cst_30 = arith.constant dense<0.000000e+00> : vector<1xf32>
    %104 = vector.multi_reduction <add>, %103, %cst_30 [1, 2] : vector<1x1x128xf32> to vector<1xf32>
    %105 = vector.shape_cast %104 : vector<1xf32> to vector<1x1x1xf32>
    %106 = vector.extract %105[0, 0, 0] : f32 from vector<1x1x1xf32>
    %cst_31 = arith.constant 6.250000e-02 : f32
    %107 = arith.mulf %106, %cst_31 : f32
    %c4 = arith.constant 4 : index
    %108 = memref.load %arg0[%c4] : memref<8xf32, #tpu.memory_space<smem>>
    %109 = arith.mulf %108, %107 : f32
    %110 = arith.addf %27, %109 : f32
    %c5 = arith.constant 5 : index
    %111 = memref.load %arg0[%c5] : memref<8xf32, #tpu.memory_space<smem>>
    %112 = arith.mulf %111, %71 : f32
    %113 = arith.addf %110, %112 : f32
    %c0_32 = arith.constant 0 : index
    %c0_33 = arith.constant 0 : index
    %c0_34 = arith.constant 0 : index
    %114 = vector.load %arg6[%c0_32, %c0_33, %c0_34] : memref<2x32x128xf32, #tpu.memory_space<vmem>>, vector<2x32x128xf32>
    %115 = vector.extract_strided_slice %114 {offsets = [0, 0, 0], sizes = [1, 32, 128], strides = [1, 1, 1]} : vector<2x32x128xf32> to vector<1x32x128xf32>
    %116 = vector.shape_cast %115 : vector<1x32x128xf32> to vector<32x128xf32>
    %117 = arith.mulf %116, %116 : vector<32x128xf32>
    %cst_35 = arith.constant dense<0.000000e+00> : vector<128xf32>
    %118 = vector.multi_reduction <add>, %117, %cst_35 [0] : vector<32x128xf32> to vector<128xf32>
    %119 = vector.shape_cast %118 : vector<128xf32> to vector<1x128xf32>
    %120 = math.sqrt %119 : vector<1x128xf32>
    %121 = vector.shape_cast %120 : vector<1x128xf32> to vector<1x1x128xf32>
    %cst_36 = arith.constant dense<0.000000e+00> : vector<1xf32>
    %122 = vector.multi_reduction <add>, %121, %cst_36 [1, 2] : vector<1x1x128xf32> to vector<1xf32>
    %123 = vector.shape_cast %122 : vector<1xf32> to vector<1x1x1xf32>
    %124 = vector.extract %123[0, 0, 0] : f32 from vector<1x1x1xf32>
    %cst_37 = arith.constant 0.000000e+00 : f32
    %125 = arith.addf %cst_37, %124 : f32
    %cst_38 = arith.constant 1.000000e-16 : f32
    %126 = vector.broadcast %cst_38 : f32 to vector<1x128xf32>
    %127 = arith.maximumf %119, %126 : vector<1x128xf32>
    %128 = math.rsqrt %127 : vector<1x128xf32>
    %129 = vector.extract_strided_slice %114 {offsets = [1, 0, 0], sizes = [1, 32, 128], strides = [1, 1, 1]} : vector<2x32x128xf32> to vector<1x32x128xf32>
    %130 = vector.shape_cast %129 : vector<1x32x128xf32> to vector<32x128xf32>
    %131 = arith.mulf %130, %130 : vector<32x128xf32>
    %cst_39 = arith.constant dense<0.000000e+00> : vector<128xf32>
    %132 = vector.multi_reduction <add>, %131, %cst_39 [0] : vector<32x128xf32> to vector<128xf32>
    %133 = vector.shape_cast %132 : vector<128xf32> to vector<1x128xf32>
    %134 = math.sqrt %133 : vector<1x128xf32>
    %135 = vector.shape_cast %134 : vector<1x128xf32> to vector<1x1x128xf32>
    %cst_40 = arith.constant dense<0.000000e+00> : vector<1xf32>
    %136 = vector.multi_reduction <add>, %135, %cst_40 [1, 2] : vector<1x1x128xf32> to vector<1xf32>
    %137 = vector.shape_cast %136 : vector<1xf32> to vector<1x1x1xf32>
    %138 = vector.extract %137[0, 0, 0] : f32 from vector<1x1x1xf32>
    %139 = arith.addf %125, %138 : f32
    %cst_41 = arith.constant 1.000000e-16 : f32
    %140 = vector.broadcast %cst_41 : f32 to vector<1x128xf32>
    %141 = arith.maximumf %133, %140 : vector<1x128xf32>
    %142 = math.rsqrt %141 : vector<1x128xf32>
    %cst_42 = arith.constant 3.125000e-02 : f32
    %143 = arith.mulf %139, %cst_42 : f32
    %cst_43 = arith.constant 0.000000e+00 : f32
    %144 = vector.broadcast %cst_43 : f32 to vector<1x128xf32>
    %145 = vector.extract_strided_slice %114 {offsets = [0, 0, 0], sizes = [1, 32, 128], strides = [1, 1, 1]} : vector<2x32x128xf32> to vector<1x32x128xf32>
    %146 = vector.shape_cast %145 : vector<1x32x128xf32> to vector<32x128xf32>
    %147 = vector.extract_strided_slice %114 {offsets = [1, 0, 0], sizes = [1, 32, 128], strides = [1, 1, 1]} : vector<2x32x128xf32> to vector<1x32x128xf32>
    %148 = vector.shape_cast %147 : vector<1x32x128xf32> to vector<32x128xf32>
    %149 = arith.mulf %146, %148 : vector<32x128xf32>
    %cst_44 = arith.constant dense<0.000000e+00> : vector<128xf32>
    %150 = vector.multi_reduction <add>, %149, %cst_44 [0] : vector<32x128xf32> to vector<128xf32>
    %151 = vector.shape_cast %150 : vector<128xf32> to vector<1x128xf32>
    %152 = arith.mulf %151, %128 : vector<1x128xf32>
    %153 = arith.mulf %152, %142 : vector<1x128xf32>
    %154 = arith.addf %144, %153 : vector<1x128xf32>
    %155 = vector.shape_cast %154 : vector<1x128xf32> to vector<1x1x128xf32>
    %cst_45 = arith.constant dense<0.000000e+00> : vector<1xf32>
    %156 = vector.multi_reduction <add>, %155, %cst_45 [1, 2] : vector<1x1x128xf32> to vector<1xf32>
    %157 = vector.shape_cast %156 : vector<1xf32> to vector<1x1x1xf32>
    %158 = vector.extract %157[0, 0, 0] : f32 from vector<1x1x1xf32>
    %cst_46 = arith.constant 6.250000e-02 : f32
    %159 = arith.mulf %158, %cst_46 : f32
    %c6 = arith.constant 6 : index
    %160 = memref.load %arg0[%c6] : memref<8xf32, #tpu.memory_space<smem>>
    %161 = arith.mulf %160, %159 : f32
    %162 = arith.subf %113, %161 : f32
    %c7 = arith.constant 7 : index
    %163 = memref.load %arg0[%c7] : memref<8xf32, #tpu.memory_space<smem>>
    %164 = arith.mulf %163, %143 : f32
    %165 = arith.addf %162, %164 : f32
    %c2_47 = arith.constant 2 : index
    %166 = memref.load %arg7[%c2_47] : memref<3xf32, #tpu.memory_space<smem>>
    memref.store %165, %arg7[%c2_47] : memref<3xf32, #tpu.memory_space<smem>>
    return
  }
}

</mosaic_0001>

<llo_original>
// kernel: tpu_custom_call.1
$region0: #{tpu_custom_call.1}
  #allocation0 [shape = 'u32[]', space=smem, size = 0x4, offset = 0x4, fixed_abs, tag = 'smem constant byte address 0x4 - core index']
  #allocation1 [shape = 'u32[72,128]{1,0:T(1,128)}', space=vmem, size = 0x9000, scoped, tag = 'internal scratch']
  %s0 = inlined_call_operand.hbm [shape: f32[8], index: 0, kind: input, shape index: {}]
  %s1 = inlined_call_operand.hbm [shape: f32[4,512], index: 1, kind: input, shape index: {}]
  %s2 = inlined_call_operand.hbm [shape: f32[4,512], index: 2, kind: input, shape index: {}]
  %s3 = inlined_call_operand.hbm [shape: f32[4,512], index: 3, kind: input, shape index: {}]
  %s4 = inlined_call_operand.hbm [shape: f32[4,512], index: 4, kind: input, shape index: {}]
  %s5 = inlined_call_operand.hbm [shape: f32[3,32,128], index: 5, kind: input, shape index: {}]
  %s6 = inlined_call_operand.hbm [shape: f32[2,32,128], index: 6, kind: input, shape index: {}]
  %s7 = inlined_call_operand.hbm [shape: f32[3], index: 7, kind: output, shape index: {}]
  %s8 = sld [smem:[#allocation0]]
  $region66: #{tpu_custom_call.1} parent=0
    _
  %s10 = ssub.s32 1, %s8
  %s11 = scalar_select 0, %s10, %s8
  $region1: #{tpu_custom_call.1} parent=0
    #allocation2 [shape = 'u8[512]{0}', space=smem, size = 0x200, scoped, tag = 'input window, operand 0, single buffered']
    #allocation3 [shape = 's32[1]{0}', space=sflag, size = 0x4, scoped, tag = 'scoped memory for tpu_custom_call.1']
    #allocation4 [shape = 's32[1]{0}', space=sflag, size = 0x4, scoped, tag = 'scoped memory for tpu_custom_call.1']
    #allocation5 [shape = 's32[1]{0}', space=sflag, size = 0x4, scoped, tag = 'scoped memory for tpu_custom_call.1']
    #allocation6 [shape = 'u8[8192]{0}', space=vmem, size = 0x2000, scoped, tag = 'input window, operand 1, single buffered']
    #allocation7 [shape = 'u8[8192]{0}', space=vmem, size = 0x2000, scoped, tag = 'input window, operand 2, single buffered']
    #allocation8 [shape = 's32[1]{0}', space=sflag, size = 0x4, scoped, tag = 'scoped memory for tpu_custom_call.1']
    #allocation9 [shape = 'u8[8192]{0}', space=vmem, size = 0x2000, scoped, tag = 'input window, operand 3, single buffered']
    #allocation10 [shape = 'u8[8192]{0}', space=vmem, size = 0x2000, scoped, tag = 'input window, operand 4, single buffered']
    #allocation11 [shape = 's32[1]{0}', space=sflag, size = 0x4, scoped, tag = 'scoped memory for tpu_custom_call.1']
    #allocation12 [shape = 'u8[49152]{0}', space=vmem, size = 0xc000, scoped, tag = 'input window, operand 5, single buffered']
    #allocation13 [shape = 'u8[32768]{0}', space=vmem, size = 0x8000, scoped, tag = 'input window, operand 6, single buffered']
    #allocation14 [shape = 's32[1]{0}', space=sflag, size = 0x4, scoped, tag = 'scoped memory for tpu_custom_call.1']
    #allocation15 [shape = 'u8[512]{0}', space=smem, size = 0x200, scoped, tag = 'output window, operand 0, single buffered']
    %12 = vsyncpa [#allocation4], 0
    %13 = vsyncpa [#allocation3], 0
    %14 = vsyncpa [#allocation8], 0
    %15 = vsyncpa [#allocation11], 0
    %16 = vsyncpa [#allocation14], 0
    %17 = vsyncpa [#allocation5], 0
    // Predicated region
    $region2: #{tpu_custom_call.1} parent=1 // pred_check
      _
    $region3: #{tpu_custom_call.1} parent=1 // pred_check_branch
      %19 = sbr.rel (0) target = $region5
    $region4: #{tpu_custom_call.1} parent=1 // pred_region
      %21 = vsyncadd [#allocation4], 0
      %s23 = sshll.u32 %s0, 4
      %s24 = int_to_ptr.hbm [resolvable:$true] %s23
      %26 = dma.hbm_to_smem %s24, 16, [#allocation2], [#allocation4]
    $region5: #{tpu_custom_call.1} parent=1 // pred_fallthru
      _
    // Predicated region
    $region6: #{tpu_custom_call.1} parent=1 // pred_check
      _
    $region7: #{tpu_custom_call.1} parent=1 // pred_check_branch
      %28 = sbr.rel (0) target = $region9
    $region8: #{tpu_custom_call.1} parent=1 // pred_region
      %30 = vsyncadd [#allocation3], 0
      %s32 = sshll.u32 %s1, 4
      %s33 = int_to_ptr.hbm [resolvable:$true] %s32
      %s34 = sshll.u32 [#allocation6], 4
      %s35 = int_to_ptr.vmem [resolvable:$true] %s34
      %37 = dma.hbm_to_vmem [thread:$0]  %s33, 256, %s35, [#allocation3]
    $region9: #{tpu_custom_call.1} parent=1 // pred_fallthru
      _
    // Predicated region
    $region10: #{tpu_custom_call.1} parent=1 // pred_check
      _
    $region11: #{tpu_custom_call.1} parent=1 // pred_check_branch
      %39 = sbr.rel (0) target = $region13
    $region12: #{tpu_custom_call.1} parent=1 // pred_region
      %41 = vsyncadd [#allocation8], 0
      %s43 = sshll.u32 %s2, 4
      %s44 = int_to_ptr.hbm [resolvable:$true] %s43
      %s45 = sshll.u32 [#allocation7], 4
      %s46 = int_to_ptr.vmem [resolvable:$true] %s45
      %48 = dma.hbm_to_vmem [thread:$0]  %s44, 256, %s46, [#allocation8]
    $region13: #{tpu_custom_call.1} parent=1 // pred_fallthru
      _
    // Predicated region
    $region14: #{tpu_custom_call.1} parent=1 // pred_check
      _
    $region15: #{tpu_custom_call.1} parent=1 // pred_check_branch
      %50 = sbr.rel (0) target = $region17
    $region16: #{tpu_custom_call.1} parent=1 // pred_region
      %52 = vsyncadd [#allocation8], 0
      %s54 = sshll.u32 %s3, 4
      %s55 = int_to_ptr.hbm [resolvable:$true] %s54
      %s56 = sshll.u32 [#allocation9], 4
      %s57 = int_to_ptr.vmem [resolvable:$true] %s56
      %59 = dma.hbm_to_vmem [thread:$0]  %s55, 256, %s57, [#allocation8]
    $region17: #{tpu_custom_call.1} parent=1 // pred_fallthru
      _
    // Predicated region
    $region18: #{tpu_custom_call.1} parent=1 // pred_check
      _
    $region19: #{tpu_custom_call.1} parent=1 // pred_check_branch
      %61 = sbr.rel (0) target = $region21
    $region20: #{tpu_custom_call.1} parent=1 // pred_region
      %63 = vsyncadd [#allocation11], 0
      %s65 = sshll.u32 %s4, 4
      %s66 = int_to_ptr.hbm [resolvable:$true] %s65
      %s67 = sshll.u32 [#allocation10], 4
      %s68 = int_to_ptr.vmem [resolvable:$true] %s67
      %70 = dma.hbm_to_vmem [thread:$0]  %s66, 256, %s68, [#allocation11]
    $region21: #{tpu_custom_call.1} parent=1 // pred_fallthru
      _
    // Predicated region
    $region22: #{tpu_custom_call.1} parent=1 // pred_check
      _
    $region23: #{tpu_custom_call.1} parent=1 // pred_check_branch
      %72 = sbr.rel (0) target = $region25
    $region24: #{tpu_custom_call.1} parent=1 // pred_region
      %74 = vsyncadd [#allocation11], 0
      %s75 = sshll.u32 %s5, 4
      %s76 = int_to_ptr.hbm [resolvable:$true] %s75
      %s77 = sshll.u32 [#allocation12], 4
      %s78 = int_to_ptr.vmem [resolvable:$true] %s77
      %83 = dma.hbm_to_vmem [thread:$0]  %s76, 1536, %s78, [#allocation11], 128, 128, 8
    $region25: #{tpu_custom_call.1} parent=1 // pred_fallthru
      _
    // Predicated region
    $region26: #{tpu_custom_call.1} parent=1 // pred_check
      _
    $region27: #{tpu_custom_call.1} parent=1 // pred_check_branch
      %85 = sbr.rel (0) target = $region29
    $region28: #{tpu_custom_call.1} parent=1 // pred_region
      %87 = vsyncadd [#allocation14], 0
      %s88 = sshll.u32 %s6, 4
      %s89 = int_to_ptr.hbm [resolvable:$true] %s88
      %s90 = sshll.u32 [#allocation13], 4
      %s91 = int_to_ptr.vmem [resolvable:$true] %s90
      %96 = dma.hbm_to_vmem [thread:$0]  %s89, 1024, %s91, [#allocation14], 128, 128, 8
    $region29: #{tpu_custom_call.1} parent=1 // pred_fallthru
      _
    // Predicated region
    $region30: #{tpu_custom_call.1} parent=1 // pred_check
      _
    $region31: #{tpu_custom_call.1} parent=1 // pred_check_branch
      %98 = sbr.rel (0) target = $region33
    $region32: #{tpu_custom_call.1} parent=1 // pred_region
      %100 = dma.done [#allocation4], 16
    $region33: #{tpu_custom_call.1} parent=1 // pred_fallthru
      _
    // Predicated region
    $region34: #{tpu_custom_call.1} parent=1 // pred_check
      _
    $region35: #{tpu_custom_call.1} parent=1 // pred_check_branch
      %102 = sbr.rel (0) target = $region37
    $region36: #{tpu_custom_call.1} parent=1 // pred_region
      %104 = dma.done [#allocation3], 256
    $region37: #{tpu_custom_call.1} parent=1 // pred_fallthru
      _
    // Predicated region
    $region38: #{tpu_custom_call.1} parent=1 // pred_check
      _
    $region39: #{tpu_custom_call.1} parent=1 // pred_check_branch
      %106 = sbr.rel (0) target = $region41
    $region40: #{tpu_custom_call.1} parent=1 // pred_region
      %108 = dma.done [#allocation8], 256
    $region41: #{tpu_custom_call.1} parent=1 // pred_fallthru
      _
    // Predicated region
    $region42: #{tpu_custom_call.1} parent=1 // pred_check
      _
    $region43: #{tpu_custom_call.1} parent=1 // pred_check_branch
      %110 = sbr.rel (0) target = $region45
    $region44: #{tpu_custom_call.1} parent=1 // pred_region
      %112 = dma.done [#allocation8], 256
    $region45: #{tpu_custom_call.1} parent=1 // pred_fallthru
      _
    // Predicated region
    $region46: #{tpu_custom_call.1} parent=1 // pred_check
      _
    $region47: #{tpu_custom_call.1} parent=1 // pred_check_branch
      %114 = sbr.rel (0) target = $region49
    $region48: #{tpu_custom_call.1} parent=1 // pred_region
      %116 = dma.done [#allocation11], 256
    $region49: #{tpu_custom_call.1} parent=1 // pred_fallthru
      _
    // Predicated region
    $region50: #{tpu_custom_call.1} parent=1 // pred_check
      _
    $region51: #{tpu_custom_call.1} parent=1 // pred_check_branch
      %118 = sbr.rel (0) target = $region53
    $region52: #{tpu_custom_call.1} parent=1 // pred_region
      %120 = dma.done [#allocation11], 1536
    $region53: #{tpu_custom_call.1} parent=1 // pred_fallthru
      _
    // Predicated region
    $region54: #{tpu_custom_call.1} parent=1 // pred_check
      _
    $region55: #{tpu_custom_call.1} parent=1 // pred_check_branch
      %122 = sbr.rel (0) target = $region57
    $region56: #{tpu_custom_call.1} parent=1 // pred_region
      %124 = dma.done [#allocation14], 1024
    $region57: #{tpu_custom_call.1} parent=1 // pred_fallthru
      _
    %125 = sfence
    %v126 = vld [vmem:[#allocation6] sm:$0xff]
    %v127 = vld [vmem:[#allocation6 + $0x8] sm:$0xff]
    %v128 = vld [vmem:[#allocation7] sm:$0xff]
    %v129 = vld [vmem:[#allocation7 + $0x8] sm:$0xff]
    %v130 = vsub.f32 %v126, %v128
    %v131 = vsub.f32 %v127, %v129
    %v132 = vand.u32 2147483647, %v130
    %v133 = vand.u32 2147483647, %v131
    %136 = vst [vmem:[#allocation1] ss:$2 sm:$0xff] %v132
    %s137 = scalar_lea.vmem [#allocation1], 16
    %138 = vst [vmem:[%s137] ss:$2 sm:$0xff] %v133
    %v139 = vld.sshfl [vmem:[#allocation1] sm:$0xff pattern:$0x75316420]
    %v140 = vld.sshfl [vmem:[#allocation1 + $0x8] sm:$0xff pattern:$0x75316420]
    %v141 = vld.sshfl [vmem:[#allocation1 + $0x10] sm:$0xff pattern:$0x75316420]
    %v142 = vld.sshfl [vmem:[#allocation1 + $0x18] sm:$0xff pattern:$0x75316420]
    %vm147 = vcmask 1043456
    %v148 = vsel %vm147, %v139, 0.0
    %v149 = vsel %vm147, %v140, 0.0
    %v150 = vadd.f32 %v148, %v149
    %v151 = vsel %vm147, %v141, 0.0
    %v152 = vadd.f32 %v150, %v151
    %v153 = vsel %vm147, %v142, 0.0
    %v154 = vadd.f32 %v152, %v153
    %155 = vadd.xlane.f32.xlu0 %v154
    %v156 = vpop.xlane.xlu0 %155
    %v157 = vrot.slane %v156, 4
    %v158 = vadd.f32 %v156, %v157
    %v159 = vrot.slane %v158, 2
    %v160 = vadd.f32 %v158, %v159
    %v161 = vrot.slane %v160, 1
    %v162 = vadd.f32 %v160, %v161
    %s163 = vtos %v162
    %s164 = sld [smem:[#allocation2 + $0x2]]
    %s165 = smul.f32 %s163, %s164
    %s166 = scalar_lea.smem [#allocation15], 0
    %167 = sst [smem:[%s166]] %s165
    %s168 = sld [smem:[#allocation2]]
    %s169 = smul.f32 %s168, %s165
    %s170 = sadd.f32 %s169, 0.0
    %v171 = vld [vmem:[#allocation9] sm:$0xff]
    %v172 = vld [vmem:[#allocation9 + $0x8] sm:$0xff]
    %v173 = vld [vmem:[#allocation10] sm:$0xff]
    %v174 = vld [vmem:[#allocation10 + $0x8] sm:$0xff]
    %v175 = vsub.f32 %v171, %v173
    %v176 = vsub.f32 %v172, %v174
    %v177 = vand.u32 2147483647, %v175
    %v178 = vand.u32 2147483647, %v176
    %181 = vst [vmem:[#allocation1] ss:$2 sm:$0xff] %v177
    %s182 = scalar_lea.vmem [#allocation1], 16
    %183 = vst [vmem:[%s182] ss:$2 sm:$0xff] %v178
    %v184 = vld.sshfl [vmem:[#allocation1] sm:$0xff pattern:$0x75316420]
    %v185 = vld.sshfl [vmem:[#allocation1 + $0x8] sm:$0xff pattern:$0x75316420]
    %v186 = vld.sshfl [vmem:[#allocation1 + $0x10] sm:$0xff pattern:$0x75316420]
    %v187 = vld.sshfl [vmem:[#allocation1 + $0x18] sm:$0xff pattern:$0x75316420]
    %v192 = vsel %vm147, %v184, 0.0
    %v193 = vsel %vm147, %v185, 0.0
    %v194 = vadd.f32 %v192, %v193
    %v195 = vsel %vm147, %v186, 0.0
    %v196 = vadd.f32 %v194, %v195
    %v197 = vsel %vm147, %v187, 0.0
    %v198 = vadd.f32 %v196, %v197
    %199 = vadd.xlane.f32.xlu0 %v198
    %v200 = vpop.xlane.xlu0 %199
    %v201 = vrot.slane %v200, 4
    %v202 = vadd.f32 %v200, %v201
    %v203 = vrot.slane %v202, 2
    %v204 = vadd.f32 %v202, %v203
    %v205 = vrot.slane %v204, 1
    %v206 = vadd.f32 %v204, %v205
    %s207 = vtos %v206
    %s208 = sld [smem:[#allocation2 + $0x3]]
    %s209 = smul.f32 %s207, %s208
    %s210 = scalar_lea.smem [#allocation15], 1
    %211 = sst [smem:[%s210]] %s209
    %s212 = sld [smem:[#allocation2 + $0x1]]
    %s213 = smul.f32 %s212, %s209
    %s214 = sadd.f32 %s170, %s213
    %v215 = vld [vmem:[#allocation12] sm:$0xff]
    %v216 = vld [vmem:[#allocation12 + $0x8] sm:$0xff]
    %v217 = vld [vmem:[#allocation12 + $0x10] sm:$0xff]
    %v218 = vld [vmem:[#allocation12 + $0x18] sm:$0xff]
    %v219 = vld [vmem:[#allocation12 + $0x20] sm:$0xff]
    %v220 = vld [vmem:[#allocation12 + $0x28] sm:$0xff]
    %v221 = vld [vmem:[#allocation12 + $0x30] sm:$0xff]
    %v222 = vld [vmem:[#allocation12 + $0x38] sm:$0xff]
    %v223 = vld [vmem:[#allocation12 + $0x40] sm:$0xff]
    %v224 = vld [vmem:[#allocation12 + $0x48] sm:$0xff]
    %v225 = vld [vmem:[#allocation12 + $0x50] sm:$0xff]
    %v226 = vld [vmem:[#allocation12 + $0x58] sm:$0xff]
    %v227 = vmul.f32 %v215, %v215
    %v228 = vmul.f32 %v216, %v216
    %v229 = vmul.f32 %v217, %v217
    %v230 = vmul.f32 %v218, %v218
    %v231 = vadd.f32 %v227, %v228
    %v232 = vadd.f32 %v231, %v229
    %v233 = vadd.f32 %v232, %v230
    %v234 = vrot.slane %v233, 4
    %v235 = vadd.f32 %v233, %v234
    %v236 = vrot.slane %v235, 2
    %v237 = vadd.f32 %v235, %v236
    %v238 = vrot.slane %v237, 1
    %v239 = vadd.f32 %v237, %v238
    %v240 = vrsqrt.pop %v239
    %v241 = vmul.f32 %v240, %v239
    %v242 = vmul.f32 %v241, %v240
    %v243 = vmul.f32 0.5, %v242
    %v244 = vsub.f32 1.5, %v243
    %v245 = vmul.f32 %v240, %v244
    %v246 = vmul.f32 %v239, %v245
    %vm247 = vcmp.eq.f32.partialorder %v239, inf
    %v248 = vsel %vm247, %v239, %v246
    %vm249 = vcmp.eq.f32.partialorder %v239, 0.0
    %v250 = vand.u32 %v239, 2147483648
    %v251 = vsel %vm249, %v250, %v248
    %vm252 = vcmask 1040384
    %v253 = vsel %vm252, %v251, 0.0
    %254 = vadd.xlane.f32.xlu0 %v253
    %v255 = vpop.xlane.xlu0 %254
    %v256 = vrot.slane %v255, 4
    %v257 = vadd.f32 %v255, %v256
    %v258 = vrot.slane %v257, 2
    %v259 = vadd.f32 %v257, %v258
    %v260 = vrot.slane %v259, 1
    %v261 = vadd.f32 %v259, %v260
    %s262 = vtos %v261
    %s263 = sadd.f32 %s262, 0.0
    %v264 = vmax.f32 %v239, 1e-16
    %v265 = vrsqrt.pop %v264
    %v266 = vmul.f32 %v265, %v264
    %v267 = vmul.f32 %v266, %v265
    %v268 = vmul.f32 0.5, %v267
    %v269 = vsub.f32 1.5, %v268
    %v270 = vmul.f32 %v265, %v269
    %vm271 = vweird.f32 %v264
    %vm272 = vweird.f32 %v265
    %vm273 = vmor %vm271, %vm272
    %v274 = vsel %vm273, %v265, %v270
    %v275 = vmul.f32 %v219, %v219
    %v276 = vmul.f32 %v220, %v220
    %v277 = vmul.f32 %v221, %v221
    %v278 = vmul.f32 %v222, %v222
    %v279 = vadd.f32 %v275, %v276
    %v280 = vadd.f32 %v279, %v277
    %v281 = vadd.f32 %v280, %v278
    %v282 = vrot.slane %v281, 4
    %v283 = vadd.f32 %v281, %v282
    %v284 = vrot.slane %v283, 2
    %v285 = vadd.f32 %v283, %v284
    %v286 = vrot.slane %v285, 1
    %v287 = vadd.f32 %v285, %v286
    %v288 = vrsqrt.pop %v287
    %v289 = vmul.f32 %v288, %v287
    %v290 = vmul.f32 %v289, %v288
    %v291 = vmul.f32 0.5, %v290
    %v292 = vsub.f32 1.5, %v291
    %v293 = vmul.f32 %v288, %v292
    %v294 = vmul.f32 %v287, %v293
    %vm295 = vcmp.eq.f32.partialorder %v287, inf
    %v296 = vsel %vm295, %v287, %v294
    %vm297 = vcmp.eq.f32.partialorder %v287, 0.0
    %v298 = vand.u32 %v287, 2147483648
    %v299 = vsel %vm297, %v298, %v296
    %v300 = vsel %vm252, %v299, 0.0
    %301 = vadd.xlane.f32.xlu0 %v300
    %v302 = vpop.xlane.xlu0 %301
    %v303 = vrot.slane %v302, 4
    %v304 = vadd.f32 %v302, %v303
    %v305 = vrot.slane %v304, 2
    %v306 = vadd.f32 %v304, %v305
    %v307 = vrot.slane %v306, 1
    %v308 = vadd.f32 %v306, %v307
    %s309 = vtos %v308
    %s310 = sadd.f32 %s263, %s309
    %v311 = vmax.f32 %v287, 1e-16
    %v312 = vrsqrt.pop %v311
    %v313 = vmul.f32 %v312, %v311
    %v314 = vmul.f32 %v313, %v312
    %v315 = vmul.f32 0.5, %v314
    %v316 = vsub.f32 1.5, %v315
    %v317 = vmul.f32 %v312, %v316
    %vm318 = vweird.f32 %v311
    %vm319 = vweird.f32 %v312
    %vm320 = vmor %vm318, %vm319
    %v321 = vsel %vm320, %v312, %v317
    %v322 = vmul.f32 %v223, %v223
    %v323 = vmul.f32 %v224, %v224
    %v324 = vmul.f32 %v225, %v225
    %v325 = vmul.f32 %v226, %v226
    %v326 = vadd.f32 %v322, %v323
    %v327 = vadd.f32 %v326, %v324
    %v328 = vadd.f32 %v327, %v325
    %v329 = vrot.slane %v328, 4
    %v330 = vadd.f32 %v328, %v329
    %v331 = vrot.slane %v330, 2
    %v332 = vadd.f32 %v330, %v331
    %v333 = vrot.slane %v332, 1
    %v334 = vadd.f32 %v332, %v333
    %v335 = vrsqrt.pop %v334
    %v336 = vmul.f32 %v335, %v334
    %v337 = vmul.f32 %v336, %v335
    %v338 = vmul.f32 0.5, %v337
    %v339 = vsub.f32 1.5, %v338
    %v340 = vmul.f32 %v335, %v339
    %v341 = vmul.f32 %v334, %v340
    %vm342 = vcmp.eq.f32.partialorder %v334, inf
    %v343 = vsel %vm342, %v334, %v341
    %vm344 = vcmp.eq.f32.partialorder %v334, 0.0
    %v345 = vand.u32 %v334, 2147483648
    %v346 = vsel %vm344, %v345, %v343
    %v347 = vsel %vm252, %v346, 0.0
    %348 = vadd.xlane.f32.xlu0 %v347
    %v349 = vpop.xlane.xlu0 %348
    %v350 = vrot.slane %v349, 4
    %v351 = vadd.f32 %v349, %v350
    %v352 = vrot.slane %v351, 2
    %v353 = vadd.f32 %v351, %v352
    %v354 = vrot.slane %v353, 1
    %v355 = vadd.f32 %v353, %v354
    %s356 = vtos %v355
    %s357 = sadd.f32 %s310, %s356
    %v358 = vmax.f32 %v334, 1e-16
    %v359 = vrsqrt.pop %v358
    %v360 = vmul.f32 %v359, %v358
    %v361 = vmul.f32 %v360, %v359
    %v362 = vmul.f32 0.5, %v361
    %v363 = vsub.f32 1.5, %v362
    %v364 = vmul.f32 %v359, %v363
    %vm365 = vweird.f32 %v358
    %vm366 = vweird.f32 %v359
    %vm367 = vmor %vm365, %vm366
    %v368 = vsel %vm367, %v359, %v364
    %s369 = smul.f32 %s357, 0.020833334
    %v370 = vmul.f32 %v215, %v219
    %v371 = vmul.f32 %v216, %v220
    %v372 = vmul.f32 %v217, %v221
    %v373 = vmul.f32 %v218, %v222
    %v374 = vadd.f32 %v370, %v371
    %v375 = vadd.f32 %v374, %v372
    %v376 = vadd.f32 %v375, %v373
    %v377 = vrot.slane %v376, 4
    %v378 = vadd.f32 %v376, %v377
    %v379 = vrot.slane %v378, 2
    %v380 = vadd.f32 %v378, %v379
    %v381 = vrot.slane %v380, 1
    %v382 = vadd.f32 %v380, %v381
    %v383 = vmul.f32 %v382, %v274
    %v384 = vmul.f32 %v383, %v321
    %v385 = vadd.f32 %v384, 0.0
    %v386 = vmul.f32 %v215, %v223
    %v387 = vmul.f32 %v216, %v224
    %v388 = vmul.f32 %v217, %v225
    %v389 = vmul.f32 %v218, %v226
    %v390 = vadd.f32 %v386, %v387
    %v391 = vadd.f32 %v390, %v388
    %v392 = vadd.f32 %v391, %v389
    %v393 = vrot.slane %v392, 4
    %v394 = vadd.f32 %v392, %v393
    %v395 = vrot.slane %v394, 2
    %v396 = vadd.f32 %v394, %v395
    %v397 = vrot.slane %v396, 1
    %v398 = vadd.f32 %v396, %v397
    %v399 = vmul.f32 %v398, %v274
    %v400 = vmul.f32 %v399, %v368
    %v401 = vadd.f32 %v385, %v400
    %v402 = vmul.f32 %v219, %v223
    %v403 = vmul.f32 %v220, %v224
    %v404 = vmul.f32 %v221, %v225
    %v405 = vmul.f32 %v222, %v226
    %v406 = vadd.f32 %v402, %v403
    %v407 = vadd.f32 %v406, %v404
    %v408 = vadd.f32 %v407, %v405
    %v409 = vrot.slane %v408, 4
    %v410 = vadd.f32 %v408, %v409
    %v411 = vrot.slane %v410, 2
    %v412 = vadd.f32 %v410, %v411
    %v413 = vrot.slane %v412, 1
    %v414 = vadd.f32 %v412, %v413
    %v415 = vmul.f32 %v414, %v321
    %v416 = vmul.f32 %v415, %v368
    %v417 = vadd.f32 %v401, %v416
    %v418 = vsel %vm252, %v417, 0.0
    %419 = vadd.xlane.f32.xlu0 %v418
    %v420 = vpop.xlane.xlu0 %419
    %v421 = vrot.slane %v420, 4
    %v422 = vadd.f32 %v420, %v421
    %v423 = vrot.slane %v422, 2
    %v424 = vadd.f32 %v422, %v423
    %v425 = vrot.slane %v424, 1
    %v426 = vadd.f32 %v424, %v425
    %s427 = vtos %v426
    %s428 = smul.f32 %s427, 0.0625
    %s429 = sld [smem:[#allocation2 + $0x4]]
    %s430 = smul.f32 %s429, %s428
    %s431 = sadd.f32 %s214, %s430
    %s432 = sld [smem:[#allocation2 + $0x5]]
    %s433 = smul.f32 %s432, %s369
    %s434 = sadd.f32 %s431, %s433
    %v435 = vld [vmem:[#allocation13] sm:$0xff]
    %v436 = vld [vmem:[#allocation13 + $0x8] sm:$0xff]
    %v437 = vld [vmem:[#allocation13 + $0x10] sm:$0xff]
    %v438 = vld [vmem:[#allocation13 + $0x18] sm:$0xff]
    %v439 = vld [vmem:[#allocation13 + $0x20] sm:$0xff]
    %v440 = vld [vmem:[#allocation13 + $0x28] sm:$0xff]
    %v441 = vld [vmem:[#allocation13 + $0x30] sm:$0xff]
    %v442 = vld [vmem:[#allocation13 + $0x38] sm:$0xff]
    %v443 = vmul.f32 %v435, %v435
    %v444 = vmul.f32 %v436, %v436
    %v445 = vmul.f32 %v437, %v437
    %v446 = vmul.f32 %v438, %v438
    %v447 = vadd.f32 %v443, %v444
    %v448 = vadd.f32 %v447, %v445
    %v449 = vadd.f32 %v448, %v446
    %v450 = vrot.slane %v449, 4
    %v451 = vadd.f32 %v449, %v450
    %v452 = vrot.slane %v451, 2
    %v453 = vadd.f32 %v451, %v452
    %v454 = vrot.slane %v453, 1
    %v455 = vadd.f32 %v453, %v454
    %v456 = vrsqrt.pop %v455
    %v457 = vmul.f32 %v456, %v455
    %v458 = vmul.f32 %v457, %v456
    %v459 = vmul.f32 0.5, %v458
    %v460 = vsub.f32 1.5, %v459
    %v461 = vmul.f32 %v456, %v460
    %v462 = vmul.f32 %v455, %v461
    %vm463 = vcmp.eq.f32.partialorder %v455, inf
    %v464 = vsel %vm463, %v455, %v462
    %vm465 = vcmp.eq.f32.partialorder %v455, 0.0
    %v466 = vand.u32 %v455, 2147483648
    %v467 = vsel %vm465, %v466, %v464
    %v468 = vsel %vm252, %v467, 0.0
    %469 = vadd.xlane.f32.xlu0 %v468
    %v470 = vpop.xlane.xlu0 %469
    %v471 = vrot.slane %v470, 4
    %v472 = vadd.f32 %v470, %v471
    %v473 = vrot.slane %v472, 2
    %v474 = vadd.f32 %v472, %v473
    %v475 = vrot.slane %v474, 1
    %v476 = vadd.f32 %v474, %v475
    %s477 = vtos %v476
    %s478 = sadd.f32 %s477, 0.0
    %v479 = vmax.f32 %v455, 1e-16
    %v480 = vrsqrt.pop %v479
    %v481 = vmul.f32 %v480, %v479
    %v482 = vmul.f32 %v481, %v480
    %v483 = vmul.f32 0.5, %v482
    %v484 = vsub.f32 1.5, %v483
    %v485 = vmul.f32 %v480, %v484
    %vm486 = vweird.f32 %v479
    %vm487 = vweird.f32 %v480
    %vm488 = vmor %vm486, %vm487
    %v489 = vsel %vm488, %v480, %v485
    %v490 = vmul.f32 %v439, %v439
    %v491 = vmul.f32 %v440, %v440
    %v492 = vmul.f32 %v441, %v441
    %v493 = vmul.f32 %v442, %v442
    %v494 = vadd.f32 %v490, %v491
    %v495 = vadd.f32 %v494, %v492
    %v496 = vadd.f32 %v495, %v493
    %v497 = vrot.slane %v496, 4
    %v498 = vadd.f32 %v496, %v497
    %v499 = vrot.slane %v498, 2
    %v500 = vadd.f32 %v498, %v499
    %v501 = vrot.slane %v500, 1
    %v502 = vadd.f32 %v500, %v501
    %v503 = vrsqrt.pop %v502
    %v504 = vmul.f32 %v503, %v502
    %v505 = vmul.f32 %v504, %v503
    %v506 = vmul.f32 0.5, %v505
    %v507 = vsub.f32 1.5, %v506
    %v508 = vmul.f32 %v503, %v507
    %v509 = vmul.f32 %v502, %v508
    %vm510 = vcmp.eq.f32.partialorder %v502, inf
    %v511 = vsel %vm510, %v502, %v509
    %vm512 = vcmp.eq.f32.partialorder %v502, 0.0
    %v513 = vand.u32 %v502, 2147483648
    %v514 = vsel %vm512, %v513, %v511
    %v515 = vsel %vm252, %v514, 0.0
    %516 = vadd.xlane.f32.xlu0 %v515
    %v517 = vpop.xlane.xlu0 %516
    %v518 = vrot.slane %v517, 4
    %v519 = vadd.f32 %v517, %v518
    %v520 = vrot.slane %v519, 2
    %v521 = vadd.f32 %v519, %v520
    %v522 = vrot.slane %v521, 1
    %v523 = vadd.f32 %v521, %v522
    %s524 = vtos %v523
    %s525 = sadd.f32 %s478, %s524
    %v526 = vmax.f32 %v502, 1e-16
    %v527 = vrsqrt.pop %v526
    %v528 = vmul.f32 %v527, %v526
    %v529 = vmul.f32 %v528, %v527
    %v530 = vmul.f32 0.5, %v529
    %v531 = vsub.f32 1.5, %v530
    %v532 = vmul.f32 %v527, %v531
    %vm533 = vweird.f32 %v526
    %vm534 = vweird.f32 %v527
    %vm535 = vmor %vm533, %vm534
    %v536 = vsel %vm535, %v527, %v532
    %s537 = smul.f32 %s525, 0.03125
    %v538 = vmul.f32 %v435, %v439
    %v539 = vmul.f32 %v436, %v440
    %v540 = vmul.f32 %v437, %v441
    %v541 = vmul.f32 %v438, %v442
    %v542 = vadd.f32 %v538, %v539
    %v543 = vadd.f32 %v542, %v540
    %v544 = vadd.f32 %v543, %v541
    %v545 = vrot.slane %v544, 4
    %v546 = vadd.f32 %v544, %v545
    %v547 = vrot.slane %v546, 2
    %v548 = vadd.f32 %v546, %v547
    %v549 = vrot.slane %v548, 1
    %v550 = vadd.f32 %v548, %v549
    %v551 = vmul.f32 %v550, %v489
    %v552 = vmul.f32 %v551, %v536
    %v553 = vadd.f32 %v552, 0.0
    %v554 = vsel %vm252, %v553, 0.0
    %555 = vadd.xlane.f32.xlu0 %v554
    %v556 = vpop.xlane.xlu0 %555
    %v557 = vrot.slane %v556, 4
    %v558 = vadd.f32 %v556, %v557
    %v559 = vrot.slane %v558, 2
    %v560 = vadd.f32 %v558, %v559
    %v561 = vrot.slane %v560, 1
    %v562 = vadd.f32 %v560, %v561
    %s563 = vtos %v562
    %s564 = smul.f32 %s563, 0.0625
    %s565 = sld [smem:[#allocation2 + $0x6]]
    %s566 = smul.f32 %s565, %s564
    %s567 = ssub.f32 %s434, %s566
    %s568 = sld [smem:[#allocation2 + $0x7]]
    %s569 = smul.f32 %s568, %s537
    %s570 = sadd.f32 %s567, %s569
    %s571 = scalar_lea.smem [#allocation15], 2
    %572 = sst [smem:[%s571]] %s570
    // Predicated region
    $region58: #{tpu_custom_call.1} parent=1 // pred_check
      _
    $region59: #{tpu_custom_call.1} parent=1 // pred_check_branch
      %574 = sbr.rel (0) target = $region61
    $region60: #{tpu_custom_call.1} parent=1 // pred_region
      %576 = vsyncadd [#allocation5], 0
      %s578 = sshll.u32 %s7, 4
      %s579 = int_to_ptr.hbm [resolvable:$true] %s578
      %581 = dma.smem_to_hbm [#allocation15], 16, %s579, [#allocation5]
    $region61: #{tpu_custom_call.1} parent=1 // pred_fallthru
      _
    // Predicated region
    $region62: #{tpu_custom_call.1} parent=1 // pred_check
      _
    $region63: #{tpu_custom_call.1} parent=1 // pred_check_branch
      %583 = sbr.rel (0) target = $region65
    $region64: #{tpu_custom_call.1} parent=1 // pred_region
      %585 = dma.done [#allocation5], 16
    $region65: #{tpu_custom_call.1} parent=1 // pred_fallthru
      _
    %586 = sfence
    %587 = vsyncpa [#allocation3], 1
    %588 = vsyncpa [#allocation8], 1
    %589 = vsyncpa [#allocation11], 1
    %590 = vsyncpa [#allocation14], 1
    %591 = vsyncpa [#allocation4], 1
    %592 = vsyncpa [#allocation5], 1

</llo_original>
